<compile_context>
chip_gen: v7x
topology: tpu7x:2x2x1
jax: 0.10.0
libtpu: 0.0.40
codegen_flags: <defaults>
</compile_context>

<pallas_src>
import functools

import jax
import jax.numpy as jnp
from jax.experimental import pallas as pl
from jax.experimental.pallas import tpu as pltpu


def _drop_path_kernel(keep_ref, x_ref, o_ref, *, inv_keep_prob):
    # keep_ref: (B,) int32 in SMEM (scalar prefetch), nonzero = keep sample.
    # x_ref/o_ref: (1, TM, Cp) tile of features for sample b = program_id(0).
    b = pl.program_id(0)
    kept = keep_ref[b] != 0

    @pl.when(kept)
    def _():
        if inv_keep_prob == 1.0:          # static python branch: no scaling requested
            o_ref[...] = x_ref[...]
        else:
            o_ref[...] = (x_ref[...] * inv_keep_prob).astype(o_ref.dtype)

    @pl.when(jnp.logical_not(kept))
    def _():
        # Dropped sample: just zero-fill; the (possibly elided) input load is
        # never consumed.
        o_ref[...] = jnp.zeros_like(o_ref)


def minkowski_drop_path(feats, keep_decisions, *, drop_prob, scale_by_keep=True,
                        points_per_sample, training=True):
    """feats: (B*P, C) features grouped by sample; keep_decisions: (B,) int (nonzero = keep)."""
    if drop_prob == 0.0 or not training:
        return feats  # identity path, same as the PyTorch module

    N, C = feats.shape
    B = keep_decisions.shape[0]
    P = points_per_sample
    assert N == B * P, "features must be grouped by sample: N == B * points_per_sample"

    keep_prob = 1.0 - drop_prob
    inv_keep_prob = (1.0 / keep_prob) if (scale_by_keep and keep_prob > 0.0) else 1.0

    # Normalized 0/1 keep flags for SMEM scalar prefetch (also used in index_map math).
    keep01 = (keep_decisions != 0).astype(jnp.int32)

    # --- lane-dense view: if C is not a multiple of 128 but P*C is, reshape each
    # sample's (P, C) block to a (P*C/128, 128) slab (exact, since the per-sample
    # scale is a scalar).  Otherwise keep (P, C) with a full-extent last dim.
    LANES = 128
    if C % LANES != 0 and (P * C) % LANES == 0:
        Pp, Cp = (P * C) // LANES, LANES
    else:
        Pp, Cp = P, C
    x = feats.reshape(B, Pp, Cp)

    # --- row-tile size decoupled from points_per_sample: ~4 MiB per buffer so
    # the double-buffered in+out footprint (~16 MiB) fits the scoped VMEM limit
    # on v5e/v6e/v7x while staying in the 85%+-of-roofline tile-size regime.
    itemsize = jnp.dtype(feats.dtype).itemsize
    sublane = max(8, 32 // itemsize)            # 8 for f32, 16 for bf16, 32 for int8
    target_rows = max(1, (4 * 1024 * 1024) // (Cp * itemsize))
    if target_rows >= Pp:
        TM = Pp                                 # whole sample fits: full-extent block
    else:
        TM = max(sublane, (target_rows // sublane) * sublane)
    n_tiles = pl.cdiv(Pp, TM)

    def x_index_map(b, t, keep_ref):
        # Kept sample -> row tile t.  Dropped sample -> always tile 0, so
        # consecutive grid steps see an unchanged input block index and the
        # input DMA is elided (the data is never consumed on the dropped path).
        return (b, t * keep_ref[b], 0)

    def o_index_map(b, t, keep_ref):
        return (b, t, 0)

    kernel = functools.partial(_drop_path_kernel, inv_keep_prob=inv_keep_prob)

    out = pl.pallas_call(
        kernel,
        out_shape=jax.ShapeDtypeStruct((B, Pp, Cp), feats.dtype),
        grid_spec=pltpu.PrefetchScalarGridSpec(
            num_scalar_prefetch=1,
            grid=(B, n_tiles),
            in_specs=[pl.BlockSpec((1, TM, Cp), x_index_map)],
            out_specs=pl.BlockSpec((1, TM, Cp), o_index_map),
        ),
        compiler_params=pltpu.CompilerParams(
            dimension_semantics=("parallel", "parallel"),
            vmem_limit_bytes=32 * 1024 * 1024,
        ),
    )(keep01, x)
    return out.reshape(N, C)


if __name__ == "__main__":
    # Small synthetic "sparse tensor": B samples, P points each, C channels.
    # C = 96 (not a multiple of 128) exercises the lane-dense reshape path.
    B, P, C = 4, 64, 96
    drop_prob = 0.5
    scale_by_keep = True

    key = jax.random.PRNGKey(0)
    k_feat, k_drop = jax.random.split(key)

    feats = jax.random.normal(k_feat, (B * P, C), dtype=jnp.float32)

    # Per-sample keep decision: keep sample iff u > drop_prob (matches
    # `random.uniform(0, 1) > self.drop_prob` in the PyTorch module).
    u = jax.random.uniform(k_drop, (B,), dtype=jnp.float32)
    keep_decisions = (u > drop_prob).astype(jnp.int32)

    out = minkowski_drop_path(
        feats, keep_decisions,
        drop_prob=drop_prob, scale_by_keep=scale_by_keep,
        points_per_sample=P, training=True)
    out = jax.block_until_ready(out)

    # Pure-JAX reference check.
    keep_prob = 1.0 - drop_prob
    mask = keep_decisions.astype(jnp.float32)
    if scale_by_keep and keep_prob > 0.0:
        mask = mask / keep_prob
    point_mask = jnp.repeat(mask, P)[:, None]          # (B*P, 1)
    ref = feats * point_mask
    assert jnp.allclose(out, ref, atol=1e-6, rtol=1e-6), "mismatch vs reference"

    print("KERNEL_OK")
</pallas_src>

<mosaic_0001>
module attributes {stable_mosaic.version = 11 : i64} {
  func.func @_drop_path_kernel(%arg0: i32, %arg1: i32, %arg2: memref<4xi32, #tpu.memory_space<smem>>, %arg3: memref<1x48x128xf32, #tpu.memory_space<vmem>>, %arg4: memref<1x48x128xf32, #tpu.memory_space<vmem>>) attributes {dimension_semantics = [#tpu.dimension_semantics<parallel>, #tpu.dimension_semantics<parallel>], iteration_bounds = array<i64: 4, 1>, scalar_prefetch = 1 : i64, scratch_operands = 0 : i64, tpu.core_type = #tpu.core_type<tc>, window_params = [{transform_indices = @transform_0, window_bounds = array<i64: 1, 48, 128>}, {transform_indices = @transform_1, window_bounds = array<i64: 1, 48, 128>}]} {
    %0 = arith.index_cast %arg0 : i32 to index
    %1 = memref.load %arg2[%0] : memref<4xi32, #tpu.memory_space<smem>>
    %c0_i32 = arith.constant 0 : i32
    %2 = arith.cmpi ne, %1, %c0_i32 : i32
    %3 = arith.extui %2 : i1 to i32
    %c0_i32_0 = arith.constant 0 : i32
    %4 = arith.cmpi ne, %3, %c0_i32_0 : i32
    scf.if %4 {
      %c0 = arith.constant 0 : index
      %c0_2 = arith.constant 0 : index
      %c0_3 = arith.constant 0 : index
      %8 = vector.load %arg3[%c0, %c0_2, %c0_3] : memref<1x48x128xf32, #tpu.memory_space<vmem>>, vector<1x48x128xf32>
      %cst = arith.constant 2.000000e+00 : f32
      %9 = vector.broadcast %cst : f32 to vector<1x48x128xf32>
      %10 = arith.mulf %8, %9 : vector<1x48x128xf32>
      %c0_4 = arith.constant 0 : index
      %c0_5 = arith.constant 0 : index
      %c0_6 = arith.constant 0 : index
      %11 = vector.load %arg4[%c0_4, %c0_5, %c0_6] : memref<1x48x128xf32, #tpu.memory_space<vmem>>, vector<1x48x128xf32>
      tpu.vector_store %arg4[%c0_4, %c0_5, %c0_6], %10 {strides = array<i32>} : memref<1x48x128xf32, #tpu.memory_space<vmem>>, vector<1x48x128xf32>,
    } else {
    }
    %true = arith.constant true
    %5 = arith.xori %2, %true : i1
    %6 = arith.extui %5 : i1 to i32
    %c0_i32_1 = arith.constant 0 : i32
    %7 = arith.cmpi ne, %6, %c0_i32_1 : i32
    scf.if %7 {
      %cst = arith.constant 0.000000e+00 : f32
      %8 = vector.broadcast %cst : f32 to vector<1x48x128xf32>
      %c0 = arith.constant 0 : index
      %c0_2 = arith.constant 0 : index
      %c0_3 = arith.constant 0 : index
      %9 = vector.load %arg4[%c0, %c0_2, %c0_3] : memref<1x48x128xf32, #tpu.memory_space<vmem>>, vector<1x48x128xf32>
      tpu.vector_store %arg4[%c0, %c0_2, %c0_3], %8 {strides = array<i32>} : memref<1x48x128xf32, #tpu.memory_space<vmem>>, vector<1x48x128xf32>,
    } else {
    }
    return
  }
  func.func @transform_0(%arg0: i32, %arg1: i32, %arg2: memref<4xi32, #tpu.memory_space<smem>>) -> (i32, i32, i32) {
    %0 = arith.index_cast %arg0 : i32 to index
    %1 = memref.load %arg2[%0] : memref<4xi32, #tpu.memory_space<smem>>
    %2 = arith.muli %arg1, %1 : i32
    %c0_i32 = arith.constant 0 : i32
    %c0_i32_0 = arith.constant 0 : i32
    return %arg0, %2, %c0_i32 : i32, i32, i32
  }
  func.func @transform_1(%arg0: i32, %arg1: i32, %arg2: memref<4xi32, #tpu.memory_space<smem>>) -> (i32, i32, i32) {
    %c0_i32 = arith.constant 0 : i32
    %c0_i32_0 = arith.constant 0 : i32
    return %arg0, %arg1, %c0_i32 : i32, i32, i32
  }
}

</mosaic_0001>

<llo_original>
// kernel: tpu_custom_call.1
$region0: #{tpu_custom_call.1}
  #allocation0 [shape = 'u32[]', space=smem, size = 0x4, offset = 0x4, fixed_abs, tag = 'smem constant byte address 0x4 - core index']
  #allocation1 [shape = 'u32[144,128]{1,0:T(1,128)}', space=vmem, size = 0x12000, scoped, tag = 'internal scratch']
  #allocation2 [shape = 's32[1]{0}', space=sflag, size = 0x4, scoped, tag = 'scoped memory for tpu_custom_call.1']
  #allocation3 [shape = 'u8[512]{0}', space=smem, size = 0x200, scoped, tag = 'prefetched SMEM operand 0']
  %s0 = inlined_call_operand.hbm [shape: s32[4], index: 0, kind: input, shape index: {}]
  %s1 = inlined_call_operand.hbm [shape: f32[4,48,128], index: 1, kind: input, shape index: {}]
  %s2 = inlined_call_operand.hbm [shape: f32[4,48,128], index: 2, kind: output, shape index: {}]
  %s3 = sld [smem:[#allocation0]]
  $region49: #{tpu_custom_call.1} parent=0
    _
  %s5 = ssub.s32 1, %s3
  %s6 = scalar_select 0, %s5, %s3
  %8 = dma.hbm_to_smem %s0, 16, [#allocation3], [#allocation2]
  %9 = dma.done [#allocation2], 16
  %10 = sfence
  $region1: #{tpu_custom_call.1} parent=0
    #allocation4 [shape = 'u8[49152]{0}', space=vmem, size = 0xc000, scoped, tag = 'input window, operand 1']
    #allocation5 [shape = 's32[2]{0}', space=sflag, size = 0x8, scoped, tag = 'scoped memory for tpu_custom_call.1']
    #allocation6 [shape = 's32[2]{0}', space=sflag, size = 0x8, scoped, tag = 'scoped memory for tpu_custom_call.1']
    #allocation7 [shape = 'u8[49152]{0}', space=vmem, size = 0xc000, scoped, tag = 'output window, operand 0']
    %11 = vsyncpa [#allocation5], 0
    %s12 = scalar_lea.sflag [#allocation5], 1
    %13 = vsyncpa %s12, 0
    %14 = vsyncpa [#allocation6], 0
    %s15 = scalar_lea.sflag [#allocation6], 1
    %16 = vsyncpa %s15, 0
    loop: start=0, step=1, limit=6
    $region2: #{tpu_custom_call.1} parent=1 // loop_pre_header
      _
    $region3: #{tpu_custom_call.1} parent=1 // loop_header
      %s18 = sphi 0, %s22
      %p19 = scmp.ge.s32.totalorder %s18, 6
      %s25 = sphi 0, %s37
      %s26 = sphi 0, %s33
      %s27 = sphi 0, %s25
      %s28 = sphi 0, %s26
      %s29 = sphi 0, %s27
      %s30 = sphi 0, %s28
      %s46 = sphi 0, %s48
      %s49 = sphi 0, %s46
      %s50 = sphi 0, %s49
      %s66 = sphi 0, %s50
      %s74 = sphi 0, %s76
      %s77 = sphi 0, %s74
      %s78 = sphi 0, %s77
      %s94 = sphi 0, %s78
    $region4: #{tpu_custom_call.1} parent=1 // loop_header_branch
      %21 = sbr.rel (%p19) target = $region8
    $region5: #{tpu_custom_call.1} parent=1 // loop_body
      %s23 = ssub.s32 %s18, 1
      %s24 = ssub.s32 %s18, 2
      %s31 = sadd.s32 1, %s26
      %p32 = scmp.ge.s32.totalorder %s31, 1
      %s33 = scalar_select %p32, 0, %s31
      %s34 = sadd.s32 1, %s25
      %s35 = scalar_select %p32, %s34, %s25
      %p36 = scmp.ge.s32.totalorder %s35, 4
      %s37 = scalar_select %p36, 0, %s35
      %s38 = sld [smem:[#allocation3 + %s25]]
      %s39 = smul.u32 %s26, %s38
      %s40 = sld [smem:[#allocation3 + %s37]]
      %s41 = smul.u32 %s33, %s40
      %s42 = ssub.s32 %s25, %s37
      %s43 = ssub.s32 %s39, %s41
      %s44 = sor.u32 %s42, %s43
      %p45 = scmp.eq.s32.totalorder %s44, 0
      %s47 = sadd.s32 %s46, 1
      %s48 = scalar_select %p45, %s46, %s47
      %p51 = pneg %p45
      %p52 = scmp.eq.s32.totalorder %s18, 3
      %p53 = por %p51, %p52
      %p54 = scmp.ne.s32.totalorder %s46, %s49
      %p55 = scmp.eq.s32.totalorder %s18, 0
      %p56 = por %p54, %p55
      %p57 = scmp.ne.s32.totalorder %s46, %s49
      %p58 = scmp.eq.s32.totalorder %s23, 3
      %p59 = por %p57, %p58
      %p60 = scmp.ne.s32.totalorder %s49, %s50
      %p61 = scmp.eq.s32.totalorder %s23, 0
      %p62 = por %p60, %p61
      %p63 = scmp.ne.s32.totalorder %s49, %s50
      %p64 = scmp.eq.s32.totalorder %s24, 3
      %p65 = por %p63, %p64
      %p67 = scmp.ne.s32.totalorder %s50, %s66
      %p68 = scmp.eq.s32.totalorder %s24, 0
      %p69 = por %p67, %p68
      %s70 = ssub.s32 %s25, %s37
      %s71 = ssub.s32 %s26, %s33
      %s72 = sor.u32 %s70, %s71
      %p73 = scmp.eq.s32.totalorder %s72, 0
      %s75 = sadd.s32 %s74, 1
      %s76 = scalar_select %p73, %s74, %s75
      %p79 = pneg %p73
      %p80 = scmp.eq.s32.totalorder %s18, 3
      %p81 = por %p79, %p80
      %p82 = scmp.ne.s32.totalorder %s74, %s77
      %p83 = scmp.eq.s32.totalorder %s18, 0
      %p84 = por %p82, %p83
      %p85 = scmp.ne.s32.totalorder %s74, %s77
      %p86 = scmp.eq.s32.totalorder %s23, 3
      %p87 = por %p85, %p86
      %p88 = scmp.ne.s32.totalorder %s77, %s78
      %p89 = scmp.eq.s32.totalorder %s23, 0
      %p90 = por %p88, %p89
      %p91 = scmp.ne.s32.totalorder %s77, %s78
      %p92 = scmp.eq.s32.totalorder %s24, 3
      %p93 = por %p91, %p92
      %p95 = scmp.ne.s32.totalorder %s78, %s94
      %p96 = scmp.eq.s32.totalorder %s24, 0
      %p97 = por %p95, %p96
      %p98 = scmp.le.s32.totalorder 1, %s18
      %p99 = scmp.lt.s32.totalorder %s18, 5
      %p100 = pnand %p98, %p99
      %p101 = pneg %p100
      // Predicated region
      $region9: #{tpu_custom_call.1} parent=5 // pred_check
        _
      $region10: #{tpu_custom_call.1} parent=5 // pred_check_branch
        %103 = sbr.rel (%p100) target = $region12
      $region11: #{tpu_custom_call.1} parent=5 // pred_region
        %s104 = ssub.s32 %s18, 1
      $region12: #{tpu_custom_call.1} parent=5 // pred_fallthru
        _
      %p105 = scmp.lt.s32.totalorder %s18, 4
      // Predicated region
      $region13: #{tpu_custom_call.1} parent=5 // pred_check
        %p106 = pneg %p105
      $region14: #{tpu_custom_call.1} parent=5 // pred_check_branch
        %108 = sbr.rel (%p106) target = $region16
      $region15: #{tpu_custom_call.1} parent=5 // pred_region
        // Predicated region
        $region17: #{tpu_custom_call.1} parent=15 // pred_check
          %p109 = pneg %p56
        $region18: #{tpu_custom_call.1} parent=15 // pred_check_branch
          %111 = sbr.rel (%p109) target = $region20
        $region19: #{tpu_custom_call.1} parent=15 // pred_region
          %s112 = sand.u32 %s46, 1
          %s113 = scalar_lea.sflag [#allocation5], %s112
          %s114 = sand.u32 %s46, 1
          %s115 = smul.addr %s114, 48
          %s116 = scalar_lea.vmem [#allocation4], %s115
          %s117 = sld [smem:[#allocation3 + %s25]]
          %s118 = smul.u32 %s26, %s117
          %s119 = smul.u32 6, %s118
          %s121 = ssub.s32 768, 768
          %122 = vsyncadd %s113, %s121
          %s123 = smul.addr %s25, 6
          %s124 = sadd.s32 %s119, %s123
          %s125 = smul.addr %s124, 128
          %s126 = scalar_lea.hbm %s1, %s125
          %s127 = sshll.u32 %s116, 4
          %s128 = int_to_ptr.vmem [resolvable:$true] %s127
          %133 = dma.hbm_to_vmem [thread:$0]  %s126, 768, %s128, %s113, 128, 128, 8
        $region20: #{tpu_custom_call.1} parent=15 // pred_fallthru
          _
      $region16: #{tpu_custom_call.1} parent=5 // pred_fallthru
        _
      %p134 = scmp.le.s32.totalorder 1, %s18
      %p135 = scmp.lt.s32.totalorder %s18, 5
      %p136 = pnand %p134, %p135
      %p137 = pneg %p136
      // Predicated region
      $region21: #{tpu_custom_call.1} parent=5 // pred_check
        _
      $region22: #{tpu_custom_call.1} parent=5 // pred_check_branch
        %139 = sbr.rel (%p136) target = $region24
      $region23: #{tpu_custom_call.1} parent=5 // pred_region
        %s140 = ssub.s32 %s18, 1
        %s141 = sand.u32 %s49, 1
        %s142 = scalar_lea.sflag [#allocation5], %s141
        %s143 = sand.u32 %s49, 1
        %s144 = smul.addr %s143, 48
        %s145 = scalar_lea.vmem [#allocation4], %s144
        // Predicated region
        $region25: #{tpu_custom_call.1} parent=23 // pred_check
          %p146 = pneg %p62
        $region26: #{tpu_custom_call.1} parent=23 // pred_check_branch
          %148 = sbr.rel (%p146) target = $region28
        $region27: #{tpu_custom_call.1} parent=23 // pred_region
          %149 = dma.done %s142, 768
        $region28: #{tpu_custom_call.1} parent=23 // pred_fallthru
          _
        %s150 = sand.u32 %s49, 1
        %s151 = scalar_lea.sflag [#allocation5], %s150
        %s152 = sand.u32 %s49, 1
        %s153 = smul.addr %s152, 48
        %s154 = scalar_lea.vmem [#allocation4], %s153
        %p155 = pneg %p62
        %p156 = pneg %p59
        %p157 = pneg %p90
        %p158 = pneg %p87
        %s159 = sand.u32 %s77, 1
        %s160 = scalar_lea.sflag [#allocation6], %s159
        %s161 = sand.u32 %s77, 1
        %s162 = smul.addr %s161, 48
        %s163 = scalar_lea.vmem [#allocation7], %s162
        %s164 = sld [smem:[#allocation3 + %s27]]
        %s165 = smul.u32 %s28, %s164
        %s166 = smul.u32 6, %s165
        %s167 = smul.u32 6, %s28
        %s168 = sld [smem:[#allocation3 + %s27]]
        %p169 = scmp.ne.s32.totalorder %s168, 0
        // Predicated region
        $region29: #{tpu_custom_call.1} parent=23 // pred_check
          %p170 = pneg %p169
        $region30: #{tpu_custom_call.1} parent=23 // pred_check_branch
          %172 = sbr.rel (%p170) target = $region32
        $region31: #{tpu_custom_call.1} parent=23 // pred_region
          %v173 = vld [vmem:[%s145] sm:$0xff]
          %v174 = vld [vmem:[%s145 + $0x8] sm:$0xff]
          %v175 = vld [vmem:[%s145 + $0x10] sm:$0xff]
          %v176 = vld [vmem:[%s145 + $0x18] sm:$0xff]
          %v177 = vld [vmem:[%s145 + $0x20] sm:$0xff]
          %v178 = vld [vmem:[%s145 + $0x28] sm:$0xff]
          %v179 = vmul.f32 %v173, 2.0
          %v180 = vmul.f32 %v174, 2.0
          %v181 = vmul.f32 %v175, 2.0
          %v182 = vmul.f32 %v176, 2.0
          %v183 = vmul.f32 %v177, 2.0
          %v184 = vmul.f32 %v178, 2.0
          %185 = vst [vmem:[%s163] sm:$0xff] %v179
          %186 = vst [vmem:[%s163 + $0x8] sm:$0xff] %v180
          %187 = vst [vmem:[%s163 + $0x10] sm:$0xff] %v181
          %188 = vst [vmem:[%s163 + $0x18] sm:$0xff] %v182
          %189 = vst [vmem:[%s163 + $0x20] sm:$0xff] %v183
          %190 = vst [vmem:[%s163 + $0x28] sm:$0xff] %v184
        $region32: #{tpu_custom_call.1} parent=23 // pred_fallthru
          _
        %p191 = scmp.eq.s32.totalorder %s168, 0
        // Predicated region
        $region33: #{tpu_custom_call.1} parent=23 // pred_check
          %p192 = pneg %p191
        $region34: #{tpu_custom_call.1} parent=23 // pred_check_branch
          %194 = sbr.rel (%p192) target = $region36
        $region35: #{tpu_custom_call.1} parent=23 // pred_region
          %195 = vst [vmem:[%s163] sm:$0xff] 0.0
          %196 = vst [vmem:[%s163 + $0x8] sm:$0xff] 0.0
          %197 = vst [vmem:[%s163 + $0x10] sm:$0xff] 0.0
          %198 = vst [vmem:[%s163 + $0x18] sm:$0xff] 0.0
          %199 = vst [vmem:[%s163 + $0x20] sm:$0xff] 0.0
          %200 = vst [vmem:[%s163 + $0x28] sm:$0xff] 0.0
        $region36: #{tpu_custom_call.1} parent=23 // pred_fallthru
          _
        %s201 = sand.u32 %s77, 1
        %s202 = scalar_lea.sflag [#allocation6], %s201
        %s203 = sand.u32 %s77, 1
        %s204 = smul.addr %s203, 48
        %s205 = scalar_lea.vmem [#allocation7], %s204
        // Predicated region
        $region37: #{tpu_custom_call.1} parent=23 // pred_check
          %p206 = pneg %p87
        $region38: #{tpu_custom_call.1} parent=23 // pred_check_branch
          %208 = sbr.rel (%p206) target = $region40
        $region39: #{tpu_custom_call.1} parent=23 // pred_region
          %s209 = smul.u32 6, %s28
          %s211 = ssub.s32 768, 768
          %212 = vsyncadd %s202, %s211
          %s213 = smul.addr %s27, 6
          %s214 = sadd.s32 %s209, %s213
          %s215 = smul.addr %s214, 128
          %s216 = scalar_lea.hbm %s2, %s215
          %s217 = sshll.u32 %s205, 4
          %s218 = int_to_ptr.vmem [resolvable:$true] %s217
          %223 = dma.vmem_to_hbm [thread:$0]  %s218, 768, %s216, %s202, 128, 128, 8
        $region40: #{tpu_custom_call.1} parent=23 // pred_fallthru
          _
      $region24: #{tpu_custom_call.1} parent=5 // pred_fallthru
        _
      %p224 = scmp.le.s32.totalorder 2, %s18
      // Predicated region
      $region41: #{tpu_custom_call.1} parent=5 // pred_check
        %p225 = pneg %p224
      $region42: #{tpu_custom_call.1} parent=5 // pred_check_branch
        %227 = sbr.rel (%p225) target = $region44
      $region43: #{tpu_custom_call.1} parent=5 // pred_region
        %s228 = ssub.s32 %s18, 2
        // Predicated region
        $region45: #{tpu_custom_call.1} parent=43 // pred_check
          %p229 = pneg %p93
        $region46: #{tpu_custom_call.1} parent=43 // pred_check_branch
          %231 = sbr.rel (%p229) target = $region48
        $region47: #{tpu_custom_call.1} parent=43 // pred_region
          %s232 = sand.u32 %s78, 1
          %s233 = scalar_lea.sflag [#allocation6], %s232
          %s234 = sand.u32 %s78, 1
          %s235 = smul.addr %s234, 48
          %s236 = scalar_lea.vmem [#allocation7], %s235
          %237 = dma.done %s233, 768
        $region48: #{tpu_custom_call.1} parent=43 // pred_fallthru
          _
      $region44: #{tpu_custom_call.1} parent=5 // pred_fallthru
        _
    $region6: #{tpu_custom_call.1} parent=1 // loop_footer
      %s22 = sadd.s32 1, %s18
    $region7: #{tpu_custom_call.1} parent=1 // loop_footer_branch
      %17 = sbr.rel target = $region3
    $region8: #{tpu_custom_call.1} parent=1 // loop_exit
      _
    %238 = vsyncpa [#allocation5], 1
    %s239 = scalar_lea.sflag [#allocation5], 1
    %240 = vsyncpa %s239, 1
    %241 = vsyncpa [#allocation6], 1
    %s242 = scalar_lea.sflag [#allocation6], 1
    %243 = vsyncpa %s242, 1

</llo_original>
